<compile_context>
chip_gen: v7x
topology: tpu7x:2x2x1
jax: 0.10.0
libtpu: 0.0.40
codegen_flags: <defaults>
</compile_context>

<pallas_src>
import functools

import jax
import jax.numpy as jnp
import numpy as np
from jax.experimental import pallas as pl
from jax.experimental.pallas import tpu as pltpu


def _lstm_kernel(x_ref, w_ref, out_ref, xproj_ref, *,
                 hidden_size, seq_len, input_size):
    """Sequential LSTM over the sequence, then linear on the last hidden state.

    x_ref     : (seq, input_size)        VMEM
    w_ref     : (rows_pad, 4H) slab      VMEM, layout (all gate lanes are [i|f|o|g],
                                         g-gate columns pre-scaled by 2):
                  rows [0, H)              : Whh_cat   (H, 4H)
                  rows [H, H+in)           : Wih_cat   (in, 4H)
                  row  H+in                : b_cat     (1, 4H)   (b_ih + b_hh)
                  row  H+in+1, lanes [0,H) : linear weight row (1, H)
                  row  H+in+2, lane 0      : linear bias
    out_ref   : (1, 1)                   VMEM
    xproj_ref : (seq, 4H)                VMEM scratch (hoisted input projection)
    """
    H = hidden_size
    r = H + input_size

    whh = w_ref[0:H, :]                              # (H, 4H)   loaded once
    wih = w_ref[H:H + input_size, :]                 # (in, 4H)
    b = w_ref[r:r + 1, :]                            # (1, 4H)
    wlin_row = w_ref[r + 1:r + 2, 0:H]               # (1, H)
    blin = w_ref[r + 2:r + 3, 0:1]                   # (1, 1)

    # Hoisted, timestep-independent input projection + bias: (seq, 4H).
    if input_size == 1:
        # Degenerate (seq,1)x(1,4H): pure VPU broadcast multiply, no MXU push.
        xproj = x_ref[...] * wih + b
    else:
        xproj = jnp.dot(x_ref[...], wih, preferred_element_type=jnp.float32) + b
    xproj_ref[...] = xproj

    h = jnp.zeros((1, H), jnp.float32)               # hidden_cell[0] is always zero
    c = jnp.zeros((1, H), jnp.float32)               # hidden_cell[1] is always zero

    # seq_len is a static Python int and small: fully unroll so the LLO scheduler
    # sees across iterations and there is no loop/branch overhead.
    for t in range(seq_len):
        # Single MXU push per step: (1, H) x (H, 4H) -> (1, 4H = 128 lanes),
        # plus a trivially-hidden (1, 128) vld of the precomputed projection row.
        gates = (jnp.dot(h, whh, preferred_element_type=jnp.float32)
                 + xproj_ref[t:t + 1, :])

        # One sigmoid over all 128 lanes. Gate lanes are [i | f | o | g] with the
        # g columns pre-scaled by 2, so tanh(x_g) == 2*sigmoid(2*x_g) - 1 comes out
        # of the same EUP pass with one extra VPU fma.
        sig = jax.nn.sigmoid(gates)
        i_g = sig[:, 0:H]
        f_g = sig[:, H:2 * H]
        o_g = sig[:, 2 * H:3 * H]
        g_g = 2.0 * sig[:, 3 * H:4 * H] - 1.0

        c = f_g * c + i_g * g_g
        h = o_g * jnp.tanh(c)

    # Final linear (output_size == 1): VPU multiply + XLU lane reduction instead of
    # a degenerate N=1 MXU matmul in the epilogue.
    # TODO(synk): for output_size > 1 fall back to an MXU dot against a (H, out) tile.
    out_ref[...] = jnp.sum(h * wlin_row, axis=-1, keepdims=True) + blin


@functools.partial(jax.jit, static_argnames=("out_size",))
def lstm_forward(input_seq, w_slab, *, out_size=1):
    """Forward pass matching LSTM.forward: returns predictions of shape (out_size,)."""
    # input_seq: (1, seq, input_size) -- batch must be 1 (module's hidden_cell is (1,1,H)).
    x2d = input_seq[0]                               # (seq, input_size)
    seq_len, input_size = x2d.shape
    H = w_slab.shape[1] // 4

    kernel = functools.partial(_lstm_kernel, hidden_size=H, seq_len=seq_len,
                               input_size=input_size)
    vmem = pl.BlockSpec(memory_space=pltpu.MemorySpace.VMEM)

    # Single invocation, whole-array VMEM specs: ~25 KB footprint, far below VMEM
    # limits on all generations -- no grid, no tiling.
    # TODO(synk): if the caller ever has multiple independent sequences, add a
    # leading "parallel" grid axis over them (2 TensorCores on v7x) with a (B, H) LHS.
    out = pl.pallas_call(
        kernel,
        out_shape=jax.ShapeDtypeStruct((1, out_size), jnp.float32),
        in_specs=[vmem, vmem],
        out_specs=vmem,
        scratch_shapes=[pltpu.VMEM((seq_len, 4 * H), jnp.float32)],
    )(x2d, w_slab)
    return out[0]                                    # (out_size,)


def _cat_gates(w, hidden_size, order):
    """(4H, X) PyTorch gate-stacked weight -> (X, 4H) lane-concatenated, reordered."""
    x_dim = w.shape[1]
    g = w.reshape(4, hidden_size, x_dim)[jnp.array(order)]    # (4, H, X)
    return g.transpose(2, 0, 1).reshape(x_dim, 4 * hidden_size)


def init_params(key, input_size, hidden_size, output_size):
    """Deterministic init mirroring PyTorch nn.LSTM / nn.Linear, plus kernel packing."""
    assert output_size == 1, "packed slab layout currently assumes output_size == 1"
    H = hidden_size
    k = 1.0 / np.sqrt(H)
    keys = jax.random.split(key, 6)
    # PyTorch layouts: weight_ih (4H, in), weight_hh (4H, H), biases (4H,), gate order [i,f,g,o].
    w_ih = jax.random.uniform(keys[0], (4 * H, input_size), jnp.float32, -k, k)
    w_hh = jax.random.uniform(keys[1], (4 * H, H), jnp.float32, -k, k)
    b_ih = jax.random.uniform(keys[2], (4 * H,), jnp.float32, -k, k)
    b_hh = jax.random.uniform(keys[3], (4 * H,), jnp.float32, -k, k)
    w_lin = jax.random.uniform(keys[4], (output_size, H), jnp.float32, -k, k)
    b_lin = jax.random.uniform(keys[5], (output_size,), jnp.float32, -k, k)

    # Kernel re-layout: gates concatenated along lanes, reordered [i,f,g,o] -> [i,f,o,g].
    order = (0, 1, 3, 2)
    wih_cat = _cat_gates(w_ih, H, order)                                   # (in, 4H)
    whh_cat = _cat_gates(w_hh, H, order)                                   # (H, 4H)
    b_cat = (b_ih + b_hh).reshape(4, H)[jnp.array(order)].reshape(1, 4 * H)  # (1, 4H)

    # Fold the g-gate tanh into the single sigmoid pass: tanh(x) = 2*sigmoid(2x) - 1,
    # so pre-scale the g-gate pre-activation (lanes [3H, 4H)) by 2.
    gate_scale = jnp.concatenate(
        [jnp.ones((3 * H,), jnp.float32), jnp.full((H,), 2.0, jnp.float32)]
    ).reshape(1, 4 * H)
    wih_cat = wih_cat * gate_scale
    whh_cat = whh_cat * gate_scale
    b_cat = b_cat * gate_scale

    # Pack everything constant into one (rows_pad, 4H) slab -> a single prologue DMA.
    rows = H + input_size + 3
    rows_pad = -(-rows // 8) * 8
    slab = jnp.zeros((rows_pad, 4 * H), jnp.float32)
    slab = slab.at[0:H, :].set(whh_cat)
    slab = slab.at[H:H + input_size, :].set(wih_cat)
    slab = slab.at[H + input_size, :].set(b_cat[0])
    slab = slab.at[H + input_size + 1, 0:H].set(w_lin[0])
    slab = slab.at[H + input_size + 2, 0].set(b_lin[0])

    raw_params = (w_ih, w_hh, b_ih, b_hh, w_lin, b_lin)
    return slab, raw_params


def _reference(input_seq, raw_params, hidden_size):
    """Pure-JAX reference using the untouched PyTorch layouts ([i,f,g,o] gate order)."""
    w_ih, w_hh, b_ih, b_hh, w_lin, b_lin = raw_params
    H = hidden_size
    x = input_seq[0]
    h = jnp.zeros((1, H), jnp.float32)
    c = jnp.zeros((1, H), jnp.float32)
    for t in range(x.shape[0]):
        x_t = x[t:t + 1]
        gates = x_t @ w_ih.T + h @ w_hh.T + b_ih + b_hh     # (1, 4H), order [i,f,g,o]
        i = jax.nn.sigmoid(gates[:, 0:H])
        f = jax.nn.sigmoid(gates[:, H:2 * H])
        g = jnp.tanh(gates[:, 2 * H:3 * H])
        o = jax.nn.sigmoid(gates[:, 3 * H:4 * H])
        c = f * c + i * g
        h = o * jnp.tanh(c)
    return (h @ w_lin.T + b_lin)[0]


if __name__ == "__main__":
    input_size, hidden_size, output_size = 1, 32, 1
    seq_len, batch = 8, 1   # batch must be 1 (module's hidden_cell is (1, 1, H))

    key = jax.random.PRNGKey(0)
    k_x, k_p = jax.random.split(key)
    input_seq = jax.random.normal(k_x, (batch, seq_len, input_size), jnp.float32)
    w_slab, raw_params = init_params(k_p, input_size, hidden_size, output_size)

    out = lstm_forward(input_seq, w_slab, out_size=output_size)
    out = jax.block_until_ready(out)

    ref = _reference(input_seq, raw_params, hidden_size)
    assert out.shape == (output_size,)
    # Tolerance slightly loosened vs the pure-f32 path: tanh is computed as
    # 2*sigmoid(2x)-1 inside the kernel (identical math, different rounding).
    np.testing.assert_allclose(np.asarray(out), np.asarray(ref), rtol=1e-4, atol=1e-4)

    print("KERNEL_OK")
</pallas_src>

<mosaic_0001>
module attributes {stable_mosaic.version = 11 : i64} {
  func.func @_lstm_kernel(%arg0: memref<8x1xf32, #tpu.memory_space<vmem>>, %arg1: memref<40x128xf32, #tpu.memory_space<vmem>>, %arg2: memref<1x1xf32, #tpu.memory_space<vmem>>, %arg3: memref<8x128xf32, #tpu.memory_space<vmem>>) attributes {dimension_semantics = [], scalar_prefetch = 0 : i64, scratch_operands = 1 : i64, tpu.core_type = #tpu.core_type<tc>} {
    %c0 = arith.constant 0 : index
    %c0_0 = arith.constant 0 : index
    %0 = vector.load %arg1[%c0, %c0_0] : memref<40x128xf32, #tpu.memory_space<vmem>>, vector<32x128xf32>
    %c32 = arith.constant 32 : index
    %c0_1 = arith.constant 0 : index
    %1 = vector.load %arg1[%c32, %c0_1] : memref<40x128xf32, #tpu.memory_space<vmem>>, vector<1x128xf32>
    %c33 = arith.constant 33 : index
    %c0_2 = arith.constant 0 : index
    %2 = vector.load %arg1[%c33, %c0_2] : memref<40x128xf32, #tpu.memory_space<vmem>>, vector<1x128xf32>
    %c34 = arith.constant 34 : index
    %c0_3 = arith.constant 0 : index
    %3 = vector.load %arg1[%c34, %c0_3] : memref<40x128xf32, #tpu.memory_space<vmem>>, vector<1x32xf32>
    %c35 = arith.constant 35 : index
    %c0_4 = arith.constant 0 : index
    %4 = vector.load %arg1[%c35, %c0_4] : memref<40x128xf32, #tpu.memory_space<vmem>>, vector<1x1xf32>
    %c0_5 = arith.constant 0 : index
    %c0_6 = arith.constant 0 : index
    %5 = vector.load %arg0[%c0_5, %c0_6] : memref<8x1xf32, #tpu.memory_space<vmem>>, vector<8x1xf32>
    %6 = vector.broadcast %5 : vector<8x1xf32> to vector<8x128xf32>
    %7 = vector.broadcast %1 : vector<1x128xf32> to vector<8x128xf32>
    %8 = arith.mulf %6, %7 : vector<8x128xf32>
    %9 = vector.broadcast %2 : vector<1x128xf32> to vector<8x128xf32>
    %10 = arith.addf %8, %9 : vector<8x128xf32>
    %c0_7 = arith.constant 0 : index
    %c0_8 = arith.constant 0 : index
    %11 = vector.load %arg3[%c0_7, %c0_8] : memref<8x128xf32, #tpu.memory_space<vmem>>, vector<8x128xf32>
    tpu.vector_store %arg3[%c0_7, %c0_8], %10 {strides = array<i32>} : memref<8x128xf32, #tpu.memory_space<vmem>>, vector<8x128xf32>,
    %cst = arith.constant 0.000000e+00 : f32
    %12 = vector.broadcast %cst : f32 to vector<1x32xf32>
    %cst_9 = arith.constant 0.000000e+00 : f32
    %13 = vector.broadcast %cst_9 : f32 to vector<1x32xf32>
    %cst_10 = arith.constant dense<0.000000e+00> : vector<1x128xf32>
    %14 = tpu.matmul %12, %0, %cst_10 {dimension_numbers = #tpu.dot_dimension_numbers<[1], [0], [0], [1], [0, 0, 1, 1], [], []>} : vector<1x32xf32>, vector<32x128xf32>, vector<1x128xf32> -> vector<1x128xf32>
    %c0_11 = arith.constant 0 : index
    %c0_12 = arith.constant 0 : index
    %15 = vector.load %arg3[%c0_11, %c0_12] : memref<8x128xf32, #tpu.memory_space<vmem>>, vector<1x128xf32>
    %16 = arith.addf %14, %15 : vector<1x128xf32>
    %17 = arith.negf %16 : vector<1x128xf32>
    %18 = math.exp %17 : vector<1x128xf32>
    %cst_13 = arith.constant 1.000000e+00 : f32
    %19 = vector.broadcast %cst_13 : f32 to vector<1x128xf32>
    %20 = arith.addf %19, %18 : vector<1x128xf32>
    %21 = arith.divf %19, %20 : vector<1x128xf32>
    %22 = vector.extract_strided_slice %21 {offsets = [0, 0], sizes = [1, 32], strides = [1, 1]} : vector<1x128xf32> to vector<1x32xf32>
    %23 = vector.extract_strided_slice %21 {offsets = [0, 32], sizes = [1, 32], strides = [1, 1]} : vector<1x128xf32> to vector<1x32xf32>
    %24 = vector.extract_strided_slice %21 {offsets = [0, 64], sizes = [1, 32], strides = [1, 1]} : vector<1x128xf32> to vector<1x32xf32>
    %25 = vector.extract_strided_slice %21 {offsets = [0, 96], sizes = [1, 32], strides = [1, 1]} : vector<1x128xf32> to vector<1x32xf32>
    %cst_14 = arith.constant 2.000000e+00 : f32
    %26 = vector.broadcast %cst_14 : f32 to vector<1x32xf32>
    %27 = arith.mulf %26, %25 : vector<1x32xf32>
    %cst_15 = arith.constant 1.000000e+00 : f32
    %28 = vector.broadcast %cst_15 : f32 to vector<1x32xf32>
    %29 = arith.subf %27, %28 : vector<1x32xf32>
    %30 = arith.mulf %23, %13 : vector<1x32xf32>
    %31 = arith.mulf %22, %29 : vector<1x32xf32>
    %32 = arith.addf %30, %31 : vector<1x32xf32>
    %33 = math.tanh %32 : vector<1x32xf32>
    %34 = arith.mulf %24, %33 : vector<1x32xf32>
    %cst_16 = arith.constant dense<0.000000e+00> : vector<1x128xf32>
    %35 = tpu.matmul %34, %0, %cst_16 {dimension_numbers = #tpu.dot_dimension_numbers<[1], [0], [0], [1], [0, 0, 1, 1], [], []>} : vector<1x32xf32>, vector<32x128xf32>, vector<1x128xf32> -> vector<1x128xf32>
    %c1 = arith.constant 1 : index
    %c0_17 = arith.constant 0 : index
    %36 = vector.load %arg3[%c1, %c0_17] : memref<8x128xf32, #tpu.memory_space<vmem>>, vector<1x128xf32>
    %37 = arith.addf %35, %36 : vector<1x128xf32>
    %38 = arith.negf %37 : vector<1x128xf32>
    %39 = math.exp %38 : vector<1x128xf32>
    %cst_18 = arith.constant 1.000000e+00 : f32
    %40 = vector.broadcast %cst_18 : f32 to vector<1x128xf32>
    %41 = arith.addf %40, %39 : vector<1x128xf32>
    %42 = arith.divf %40, %41 : vector<1x128xf32>
    %43 = vector.extract_strided_slice %42 {offsets = [0, 0], sizes = [1, 32], strides = [1, 1]} : vector<1x128xf32> to vector<1x32xf32>
    %44 = vector.extract_strided_slice %42 {offsets = [0, 32], sizes = [1, 32], strides = [1, 1]} : vector<1x128xf32> to vector<1x32xf32>
    %45 = vector.extract_strided_slice %42 {offsets = [0, 64], sizes = [1, 32], strides = [1, 1]} : vector<1x128xf32> to vector<1x32xf32>
    %46 = vector.extract_strided_slice %42 {offsets = [0, 96], sizes = [1, 32], strides = [1, 1]} : vector<1x128xf32> to vector<1x32xf32>
    %cst_19 = arith.constant 2.000000e+00 : f32
    %47 = vector.broadcast %cst_19 : f32 to vector<1x32xf32>
    %48 = arith.mulf %47, %46 : vector<1x32xf32>
    %cst_20 = arith.constant 1.000000e+00 : f32
    %49 = vector.broadcast %cst_20 : f32 to vector<1x32xf32>
    %50 = arith.subf %48, %49 : vector<1x32xf32>
    %51 = arith.mulf %44, %32 : vector<1x32xf32>
    %52 = arith.mulf %43, %50 : vector<1x32xf32>
    %53 = arith.addf %51, %52 : vector<1x32xf32>
    %54 = math.tanh %53 : vector<1x32xf32>
    %55 = arith.mulf %45, %54 : vector<1x32xf32>
    %cst_21 = arith.constant dense<0.000000e+00> : vector<1x128xf32>
    %56 = tpu.matmul %55, %0, %cst_21 {dimension_numbers = #tpu.dot_dimension_numbers<[1], [0], [0], [1], [0, 0, 1, 1], [], []>} : vector<1x32xf32>, vector<32x128xf32>, vector<1x128xf32> -> vector<1x128xf32>
    %c2 = arith.constant 2 : index
    %c0_22 = arith.constant 0 : index
    %57 = vector.load %arg3[%c2, %c0_22] : memref<8x128xf32, #tpu.memory_space<vmem>>, vector<1x128xf32>
    %58 = arith.addf %56, %57 : vector<1x128xf32>
    %59 = arith.negf %58 : vector<1x128xf32>
    %60 = math.exp %59 : vector<1x128xf32>
    %cst_23 = arith.constant 1.000000e+00 : f32
    %61 = vector.broadcast %cst_23 : f32 to vector<1x128xf32>
    %62 = arith.addf %61, %60 : vector<1x128xf32>
    %63 = arith.divf %61, %62 : vector<1x128xf32>
    %64 = vector.extract_strided_slice %63 {offsets = [0, 0], sizes = [1, 32], strides = [1, 1]} : vector<1x128xf32> to vector<1x32xf32>
    %65 = vector.extract_strided_slice %63 {offsets = [0, 32], sizes = [1, 32], strides = [1, 1]} : vector<1x128xf32> to vector<1x32xf32>
    %66 = vector.extract_strided_slice %63 {offsets = [0, 64], sizes = [1, 32], strides = [1, 1]} : vector<1x128xf32> to vector<1x32xf32>
    %67 = vector.extract_strided_slice %63 {offsets = [0, 96], sizes = [1, 32], strides = [1, 1]} : vector<1x128xf32> to vector<1x32xf32>
    %cst_24 = arith.constant 2.000000e+00 : f32
    %68 = vector.broadcast %cst_24 : f32 to vector<1x32xf32>
    %69 = arith.mulf %68, %67 : vector<1x32xf32>
    %cst_25 = arith.constant 1.000000e+00 : f32
    %70 = vector.broadcast %cst_25 : f32 to vector<1x32xf32>
    %71 = arith.subf %69, %70 : vector<1x32xf32>
    %72 = arith.mulf %65, %53 : vector<1x32xf32>
    %73 = arith.mulf %64, %71 : vector<1x32xf32>
    %74 = arith.addf %72, %73 : vector<1x32xf32>
    %75 = math.tanh %74 : vector<1x32xf32>
    %76 = arith.mulf %66, %75 : vector<1x32xf32>
    %cst_26 = arith.constant dense<0.000000e+00> : vector<1x128xf32>
    %77 = tpu.matmul %76, %0, %cst_26 {dimension_numbers = #tpu.dot_dimension_numbers<[1], [0], [0], [1], [0, 0, 1, 1], [], []>} : vector<1x32xf32>, vector<32x128xf32>, vector<1x128xf32> -> vector<1x128xf32>
    %c3 = arith.constant 3 : index
    %c0_27 = arith.constant 0 : index
    %78 = vector.load %arg3[%c3, %c0_27] : memref<8x128xf32, #tpu.memory_space<vmem>>, vector<1x128xf32>
    %79 = arith.addf %77, %78 : vector<1x128xf32>
    %80 = arith.negf %79 : vector<1x128xf32>
    %81 = math.exp %80 : vector<1x128xf32>
    %cst_28 = arith.constant 1.000000e+00 : f32
    %82 = vector.broadcast %cst_28 : f32 to vector<1x128xf32>
    %83 = arith.addf %82, %81 : vector<1x128xf32>
    %84 = arith.divf %82, %83 : vector<1x128xf32>
    %85 = vector.extract_strided_slice %84 {offsets = [0, 0], sizes = [1, 32], strides = [1, 1]} : vector<1x128xf32> to vector<1x32xf32>
    %86 = vector.extract_strided_slice %84 {offsets = [0, 32], sizes = [1, 32], strides = [1, 1]} : vector<1x128xf32> to vector<1x32xf32>
    %87 = vector.extract_strided_slice %84 {offsets = [0, 64], sizes = [1, 32], strides = [1, 1]} : vector<1x128xf32> to vector<1x32xf32>
    %88 = vector.extract_strided_slice %84 {offsets = [0, 96], sizes = [1, 32], strides = [1, 1]} : vector<1x128xf32> to vector<1x32xf32>
    %cst_29 = arith.constant 2.000000e+00 : f32
    %89 = vector.broadcast %cst_29 : f32 to vector<1x32xf32>
    %90 = arith.mulf %89, %88 : vector<1x32xf32>
    %cst_30 = arith.constant 1.000000e+00 : f32
    %91 = vector.broadcast %cst_30 : f32 to vector<1x32xf32>
    %92 = arith.subf %90, %91 : vector<1x32xf32>
    %93 = arith.mulf %86, %74 : vector<1x32xf32>
    %94 = arith.mulf %85, %92 : vector<1x32xf32>
    %95 = arith.addf %93, %94 : vector<1x32xf32>
    %96 = math.tanh %95 : vector<1x32xf32>
    %97 = arith.mulf %87, %96 : vector<1x32xf32>
    %cst_31 = arith.constant dense<0.000000e+00> : vector<1x128xf32>
    %98 = tpu.matmul %97, %0, %cst_31 {dimension_numbers = #tpu.dot_dimension_numbers<[1], [0], [0], [1], [0, 0, 1, 1], [], []>} : vector<1x32xf32>, vector<32x128xf32>, vector<1x128xf32> -> vector<1x128xf32>
    %c4 = arith.constant 4 : index
    %c0_32 = arith.constant 0 : index
    %99 = vector.load %arg3[%c4, %c0_32] : memref<8x128xf32, #tpu.memory_space<vmem>>, vector<1x128xf32>
    %100 = arith.addf %98, %99 : vector<1x128xf32>
    %101 = arith.negf %100 : vector<1x128xf32>
    %102 = math.exp %101 : vector<1x128xf32>
    %cst_33 = arith.constant 1.000000e+00 : f32
    %103 = vector.broadcast %cst_33 : f32 to vector<1x128xf32>
    %104 = arith.addf %103, %102 : vector<1x128xf32>
    %105 = arith.divf %103, %104 : vector<1x128xf32>
    %106 = vector.extract_strided_slice %105 {offsets = [0, 0], sizes = [1, 32], strides = [1, 1]} : vector<1x128xf32> to vector<1x32xf32>
    %107 = vector.extract_strided_slice %105 {offsets = [0, 32], sizes = [1, 32], strides = [1, 1]} : vector<1x128xf32> to vector<1x32xf32>
    %108 = vector.extract_strided_slice %105 {offsets = [0, 64], sizes = [1, 32], strides = [1, 1]} : vector<1x128xf32> to vector<1x32xf32>
    %109 = vector.extract_strided_slice %105 {offsets = [0, 96], sizes = [1, 32], strides = [1, 1]} : vector<1x128xf32> to vector<1x32xf32>
    %cst_34 = arith.constant 2.000000e+00 : f32
    %110 = vector.broadcast %cst_34 : f32 to vector<1x32xf32>
    %111 = arith.mulf %110, %109 : vector<1x32xf32>
    %cst_35 = arith.constant 1.000000e+00 : f32
    %112 = vector.broadcast %cst_35 : f32 to vector<1x32xf32>
    %113 = arith.subf %111, %112 : vector<1x32xf32>
    %114 = arith.mulf %107, %95 : vector<1x32xf32>
    %115 = arith.mulf %106, %113 : vector<1x32xf32>
    %116 = arith.addf %114, %115 : vector<1x32xf32>
    %117 = math.tanh %116 : vector<1x32xf32>
    %118 = arith.mulf %108, %117 : vector<1x32xf32>
    %cst_36 = arith.constant dense<0.000000e+00> : vector<1x128xf32>
    %119 = tpu.matmul %118, %0, %cst_36 {dimension_numbers = #tpu.dot_dimension_numbers<[1], [0], [0], [1], [0, 0, 1, 1], [], []>} : vector<1x32xf32>, vector<32x128xf32>, vector<1x128xf32> -> vector<1x128xf32>
    %c5 = arith.constant 5 : index
    %c0_37 = arith.constant 0 : index
    %120 = vector.load %arg3[%c5, %c0_37] : memref<8x128xf32, #tpu.memory_space<vmem>>, vector<1x128xf32>
    %121 = arith.addf %119, %120 : vector<1x128xf32>
    %122 = arith.negf %121 : vector<1x128xf32>
    %123 = math.exp %122 : vector<1x128xf32>
    %cst_38 = arith.constant 1.000000e+00 : f32
    %124 = vector.broadcast %cst_38 : f32 to vector<1x128xf32>
    %125 = arith.addf %124, %123 : vector<1x128xf32>
    %126 = arith.divf %124, %125 : vector<1x128xf32>
    %127 = vector.extract_strided_slice %126 {offsets = [0, 0], sizes = [1, 32], strides = [1, 1]} : vector<1x128xf32> to vector<1x32xf32>
    %128 = vector.extract_strided_slice %126 {offsets = [0, 32], sizes = [1, 32], strides = [1, 1]} : vector<1x128xf32> to vector<1x32xf32>
    %129 = vector.extract_strided_slice %126 {offsets = [0, 64], sizes = [1, 32], strides = [1, 1]} : vector<1x128xf32> to vector<1x32xf32>
    %130 = vector.extract_strided_slice %126 {offsets = [0, 96], sizes = [1, 32], strides = [1, 1]} : vector<1x128xf32> to vector<1x32xf32>
    %cst_39 = arith.constant 2.000000e+00 : f32
    %131 = vector.broadcast %cst_39 : f32 to vector<1x32xf32>
    %132 = arith.mulf %131, %130 : vector<1x32xf32>
    %cst_40 = arith.constant 1.000000e+00 : f32
    %133 = vector.broadcast %cst_40 : f32 to vector<1x32xf32>
    %134 = arith.subf %132, %133 : vector<1x32xf32>
    %135 = arith.mulf %128, %116 : vector<1x32xf32>
    %136 = arith.mulf %127, %134 : vector<1x32xf32>
    %137 = arith.addf %135, %136 : vector<1x32xf32>
    %138 = math.tanh %137 : vector<1x32xf32>
    %139 = arith.mulf %129, %138 : vector<1x32xf32>
    %cst_41 = arith.constant dense<0.000000e+00> : vector<1x128xf32>
    %140 = tpu.matmul %139, %0, %cst_41 {dimension_numbers = #tpu.dot_dimension_numbers<[1], [0], [0], [1], [0, 0, 1, 1], [], []>} : vector<1x32xf32>, vector<32x128xf32>, vector<1x128xf32> -> vector<1x128xf32>
    %c6 = arith.constant 6 : index
    %c0_42 = arith.constant 0 : index
    %141 = vector.load %arg3[%c6, %c0_42] : memref<8x128xf32, #tpu.memory_space<vmem>>, vector<1x128xf32>
    %142 = arith.addf %140, %141 : vector<1x128xf32>
    %143 = arith.negf %142 : vector<1x128xf32>
    %144 = math.exp %143 : vector<1x128xf32>
    %cst_43 = arith.constant 1.000000e+00 : f32
    %145 = vector.broadcast %cst_43 : f32 to vector<1x128xf32>
    %146 = arith.addf %145, %144 : vector<1x128xf32>
    %147 = arith.divf %145, %146 : vector<1x128xf32>
    %148 = vector.extract_strided_slice %147 {offsets = [0, 0], sizes = [1, 32], strides = [1, 1]} : vector<1x128xf32> to vector<1x32xf32>
    %149 = vector.extract_strided_slice %147 {offsets = [0, 32], sizes = [1, 32], strides = [1, 1]} : vector<1x128xf32> to vector<1x32xf32>
    %150 = vector.extract_strided_slice %147 {offsets = [0, 64], sizes = [1, 32], strides = [1, 1]} : vector<1x128xf32> to vector<1x32xf32>
    %151 = vector.extract_strided_slice %147 {offsets = [0, 96], sizes = [1, 32], strides = [1, 1]} : vector<1x128xf32> to vector<1x32xf32>
    %cst_44 = arith.constant 2.000000e+00 : f32
    %152 = vector.broadcast %cst_44 : f32 to vector<1x32xf32>
    %153 = arith.mulf %152, %151 : vector<1x32xf32>
    %cst_45 = arith.constant 1.000000e+00 : f32
    %154 = vector.broadcast %cst_45 : f32 to vector<1x32xf32>
    %155 = arith.subf %153, %154 : vector<1x32xf32>
    %156 = arith.mulf %149, %137 : vector<1x32xf32>
    %157 = arith.mulf %148, %155 : vector<1x32xf32>
    %158 = arith.addf %156, %157 : vector<1x32xf32>
    %159 = math.tanh %158 : vector<1x32xf32>
    %160 = arith.mulf %150, %159 : vector<1x32xf32>
    %cst_46 = arith.constant dense<0.000000e+00> : vector<1x128xf32>
    %161 = tpu.matmul %160, %0, %cst_46 {dimension_numbers = #tpu.dot_dimension_numbers<[1], [0], [0], [1], [0, 0, 1, 1], [], []>} : vector<1x32xf32>, vector<32x128xf32>, vector<1x128xf32> -> vector<1x128xf32>
    %c7 = arith.constant 7 : index
    %c0_47 = arith.constant 0 : index
    %162 = vector.load %arg3[%c7, %c0_47] : memref<8x128xf32, #tpu.memory_space<vmem>>, vector<1x128xf32>
    %163 = arith.addf %161, %162 : vector<1x128xf32>
    %164 = arith.negf %163 : vector<1x128xf32>
    %165 = math.exp %164 : vector<1x128xf32>
    %cst_48 = arith.constant 1.000000e+00 : f32
    %166 = vector.broadcast %cst_48 : f32 to vector<1x128xf32>
    %167 = arith.addf %166, %165 : vector<1x128xf32>
    %168 = arith.divf %166, %167 : vector<1x128xf32>
    %169 = vector.extract_strided_slice %168 {offsets = [0, 0], sizes = [1, 32], strides = [1, 1]} : vector<1x128xf32> to vector<1x32xf32>
    %170 = vector.extract_strided_slice %168 {offsets = [0, 32], sizes = [1, 32], strides = [1, 1]} : vector<1x128xf32> to vector<1x32xf32>
    %171 = vector.extract_strided_slice %168 {offsets = [0, 64], sizes = [1, 32], strides = [1, 1]} : vector<1x128xf32> to vector<1x32xf32>
    %172 = vector.extract_strided_slice %168 {offsets = [0, 96], sizes = [1, 32], strides = [1, 1]} : vector<1x128xf32> to vector<1x32xf32>
    %cst_49 = arith.constant 2.000000e+00 : f32
    %173 = vector.broadcast %cst_49 : f32 to vector<1x32xf32>
    %174 = arith.mulf %173, %172 : vector<1x32xf32>
    %cst_50 = arith.constant 1.000000e+00 : f32
    %175 = vector.broadcast %cst_50 : f32 to vector<1x32xf32>
    %176 = arith.subf %174, %175 : vector<1x32xf32>
    %177 = arith.mulf %170, %158 : vector<1x32xf32>
    %178 = arith.mulf %169, %176 : vector<1x32xf32>
    %179 = arith.addf %177, %178 : vector<1x32xf32>
    %180 = math.tanh %179 : vector<1x32xf32>
    %181 = arith.mulf %171, %180 : vector<1x32xf32>
    %182 = arith.mulf %181, %3 : vector<1x32xf32>
    %cst_51 = arith.constant dense<0.000000e+00> : vector<1xf32>
    %183 = vector.multi_reduction <add>, %182, %cst_51 [1] : vector<1x32xf32> to vector<1xf32>
    %184 = vector.shape_cast %183 : vector<1xf32> to vector<1x1xf32>
    %185 = arith.addf %184, %4 : vector<1x1xf32>
    %c0_52 = arith.constant 0 : index
    %c0_53 = arith.constant 0 : index
    %186 = vector.load %arg2[%c0_52, %c0_53] : memref<1x1xf32, #tpu.memory_space<vmem>>, vector<1x1xf32>
    tpu.vector_store %arg2[%c0_52, %c0_53], %185 {strides = array<i32>} : memref<1x1xf32, #tpu.memory_space<vmem>>, vector<1x1xf32>,
    return
  }
}

</mosaic_0001>

<llo_original>
// kernel: lstm_forward.1
$region0: #{lstm_forward.1}
  #allocation0 [shape = 'u32[]', space=smem, size = 0x4, offset = 0x4, fixed_abs, tag = 'smem constant byte address 0x4 - core index']
  #allocation1 [shape = 'u32[144,128]{1,0:T(1,128)}', space=vmem, size = 0x12000, scoped, tag = 'internal scratch']
  #allocation2 [shape = 'f32[8,128]{1,0:T(8,128)}', space=vmem, size = 0x1000, scoped, tag = 'scratch operand']
  %s0 = inlined_call_operand.vmem [shape: f32[8,1], index: 0, kind: input, shape index: {}]
  %s1 = inlined_call_operand.hbm [shape: f32[40,128], index: 1, kind: input, shape index: {}]
  %s2 = inlined_call_operand.hbm [shape: f32[1,1], index: 2, kind: output, shape index: {}]
  %s3 = sld [smem:[#allocation0]]
  $region22: #{lstm_forward.1} parent=0
    _
  %s5 = ssub.s32 1, %s3
  %s6 = scalar_select 0, %s5, %s3
  $region1: #{lstm_forward.1} parent=0
    #allocation3 [shape = 'u8[20480]{0}', space=vmem, size = 0x5000, scoped, tag = 'input window, operand 1, single buffered']
    #allocation4 [shape = 's32[1]{0}', space=sflag, size = 0x4, scoped, tag = 'scoped memory for lstm_forward.1']
    #allocation5 [shape = 's32[1]{0}', space=sflag, size = 0x4, scoped, tag = 'scoped memory for lstm_forward.1']
    #allocation6 [shape = 'u8[512]{0}', space=vmem, size = 0x400, scoped, tag = 'output window, operand 0, single buffered']
    %7 = vsyncpa [#allocation4], 0
    %8 = vsyncpa [#allocation5], 0
    // Predicated region
    $region2: #{lstm_forward.1} parent=1 // pred_check
      _
    $region3: #{lstm_forward.1} parent=1 // pred_check_branch
      %10 = sbr.rel (0) target = $region5
    $region4: #{lstm_forward.1} parent=1 // pred_region
      _
    $region5: #{lstm_forward.1} parent=1 // pred_fallthru
      _
    // Predicated region
    $region6: #{lstm_forward.1} parent=1 // pred_check
      _
    $region7: #{lstm_forward.1} parent=1 // pred_check_branch
      %12 = sbr.rel (0) target = $region9
    $region8: #{lstm_forward.1} parent=1 // pred_region
      %s14 = ssub.s32 640, 640
      %15 = vsyncadd [#allocation4], %s14
      %s16 = sshll.u32 [#allocation3], 4
      %s17 = int_to_ptr.vmem [resolvable:$true] %s16
      %22 = dma.hbm_to_vmem [thread:$0]  %s1, 640, %s17, [#allocation4], 128, 128, 8
    $region9: #{lstm_forward.1} parent=1 // pred_fallthru
      _
    // Predicated region
    $region10: #{lstm_forward.1} parent=1 // pred_check
      _
    $region11: #{lstm_forward.1} parent=1 // pred_check_branch
      %24 = sbr.rel (0) target = $region13
    $region12: #{lstm_forward.1} parent=1 // pred_region
      %25 = dma.done [#allocation4], 640
    $region13: #{lstm_forward.1} parent=1 // pred_fallthru
      _
    %v26 = vld [vmem:[#allocation3] sm:$0xff]
    %v27 = vld [vmem:[#allocation3 + $0x8] sm:$0xff]
    %v28 = vld [vmem:[#allocation3 + $0x10] sm:$0xff]
    %v29 = vld [vmem:[#allocation3 + $0x18] sm:$0xff]
    %v30 = vld [vmem:[#allocation3 + $0x20] sm:$0x1]
    %v31 = vld [vmem:[#allocation3 + $0x21] sm:$0x1]
    %v32 = vld [vmem:[#allocation3 + $0x22] sm:$0x1]
    %v33 = vld [vmem:[#allocation3 + $0x23] sm:$0x1]
    %v34 = vld [vmem:[%s0] sm:$0xff]
    %36 = vset.pattern.permute.xlu0 0
    %37 = vperm.xlu0 %36, %v34
    %v38 = vpop.permute.xlu0 %37
    %v40 = vlaneseq
    %v41 = vshrl.u32 %v40, 7
    %v42 = vsub.s32 0, %v41
    %v43 = vrot.slane %v30, %v42
    %v44 = vmul.f32 %v38, %v43
    %v45 = vlaneseq
    %v46 = vshrl.u32 %v45, 7
    %v47 = vsub.s32 0, %v46
    %v48 = vrot.slane %v31, %v47
    %v49 = vadd.f32 %v44, %v48
    %50 = vst [vmem:[#allocation2] sm:$0xff] %v49
    %v51 = vld [vmem:[#allocation2] sm:$0x1]
    %vm52 = vcmask 261120
    %v54 = vsel %vm52, 0.0, 0
    %56 = vmatprep.subr.mxu0 0.0
    %57 = vmatpush1.msra.mxu0 %v26
    %58 = vmatprep.subr.mxu0 0.0
    %59 = vmatpush1.msra.mxu0 %v27
    %60 = vmatprep.subr.mxu0 0.0
    %61 = vmatpush1.msra.mxu0 %v28
    %62 = vmatprep.subr.mxu0 0.0
    %63 = vmatpush1.msra.mxu0 %v29
    %64 = vmatprep.subr.mxu0 0.0
    %65 = vmatpush1.msra.mxu0 0.0
    %66 = vmatprep.subr.mxu0 0.0
    %67 = vmatpush1.msra.mxu0 0.0
    %68 = vmatprep.subr.mxu0 0.0
    %69 = vmatpush1.msra.mxu0 0.0
    %70 = vmatprep.subr.mxu0 0.0
    %71 = vmatpush1.msra.mxu0 0.0
    %72 = vmatprep.subr.mxu0 0.0
    %73 = vmatpush1.msra.mxu0 0.0
    %74 = vmatprep.subr.mxu0 0.0
    %75 = vmatpush1.msra.mxu0 0.0
    %76 = vmatprep.subr.mxu0 0.0
    %77 = vmatpush1.msra.mxu0 0.0
    %78 = vmatprep.subr.mxu0 0.0
    %79 = vmatpush1.msra.mxu0 0.0
    %80 = vmatprep.subr.mxu0 0.0
    %81 = vmatpush1.msra.mxu0 0.0
    %82 = vmatprep.subr.mxu0 0.0
    %83 = vmatpush1.msra.mxu0 0.0
    %84 = vmatprep.subr.mxu0 0.0
    %85 = vmatpush1.msra.mxu0 0.0
    %86 = vmatprep.subr.mxu0 0.0
    %87 = vmatpush1.msra.mxu0 0.0
    %88 = vmatprep.subr.mxu0 0.0
    %89 = vmatpush1.msra.mxu0 0.0
    %90 = vmatprep.subr.mxu0 0.0
    %91 = vmatpush1.msra.mxu0 0.0
    %92 = vmatprep.subr.mxu0 0.0
    %93 = vmatpush1.msra.mxu0 0.0
    %94 = vmatprep.subr.mxu0 0.0
    %95 = vmatpush1.msra.mxu0 0.0
    %96 = vmatprep.subr.mxu0 0.0
    %97 = vmatpush1.msra.mxu0 0.0
    %98 = vmatprep.subr.mxu0 0.0
    %99 = vmatpush1.msra.mxu0 0.0
    %100 = vmatprep.subr.mxu0 0.0
    %101 = vmatpush1.msra.mxu0 0.0
    %102 = vmatprep.subr.mxu0 0.0
    %103 = vmatpush1.msra.mxu0 0.0
    %104 = vmatprep.subr.mxu0 0.0
    %105 = vmatpush1.msra.mxu0 0.0
    %106 = vmatprep.subr.mxu0 0.0
    %107 = vmatpush1.msra.mxu0 0.0
    %108 = vmatprep.subr.mxu0 0.0
    %109 = vmatpush1.msra.mxu0 0.0
    %110 = vmatprep.subr.mxu0 0.0
    %111 = vmatpush1.msra.mxu0 0.0
    %112 = vmatprep.subr.mxu0 0.0
    %113 = vmatpush1.msra.mxu0 0.0
    %114 = vmatprep.subr.mxu0 0.0
    %115 = vmatpush1.msra.mxu0 0.0
    %116 = vmatprep.subr.mxu0 0.0
    %117 = vmatpush1.msra.mxu0 0.0
    %118 = vmatprep.subr.mxu0 0.0
    %119 = vmatpush1.msra.mxu0 0.0
    %120 = vmatprep.mubr.f32.mxu0 0.0
    %121 = vmatmul.mubr.f32.gmra.mrb[0].mxu0 %v54
    %v122 = vpop.f32.mrb[0].mxu0
    %v123 = vadd.f32 %v51, %v122
    %v124 = vpop.f32.mrb[0].mxu0
    %125 = vdwg.mxu0
    %v126 = vxor.u32 %v123, 2147483648
    %v127 = vmul.f32 %v126, 1.442695
    %v128 = vpow.pop %v127
    %v129 = vadd.f32 %v128, 1.0
    %v130 = vrcp.pop %v129
    %v131 = vmul.f32 1.0, %v130
    %v132 = vmul.f32 %v131, 2.0
    %v133 = vsub.f32 %v132, 1.0
    %v134 = vmul.f32 %v131, 0.0
    %136 = vrot.lane.b32.xlu0 %v133, 32
    %v137 = vpop.permute.xlu0 %136
    %v139 = vmul.f32 %v131, %v137
    %141 = vrot.lane.b32.xlu0 %v139, 32
    %v142 = vpop.permute.xlu0 %141
    %v144 = vadd.f32 %v134, %v142
    %v145 = vtanh.pop %v144
    %147 = vrot.lane.b32.xlu0 %v145, 32
    %v148 = vpop.permute.xlu0 %147
    %v150 = vmul.f32 %v131, %v148
    %v151 = vld [vmem:[#allocation2 + $0x1] sm:$0x1]
    %153 = vrot.lane.b32.xlu0 %v150, 64
    %v154 = vpop.permute.xlu0 %153
    %v155 = vsel %vm52, %v154, 0
    %157 = vmatprep.subr.mxu0 0.0
    %158 = vmatpush1.msra.mxu0 %v26
    %159 = vmatprep.subr.mxu0 0.0
    %160 = vmatpush1.msra.mxu0 %v27
    %161 = vmatprep.subr.mxu0 0.0
    %162 = vmatpush1.msra.mxu0 %v28
    %163 = vmatprep.subr.mxu0 0.0
    %164 = vmatpush1.msra.mxu0 %v29
    %165 = vmatprep.subr.mxu0 0.0
    %166 = vmatpush1.msra.mxu0 0.0
    %167 = vmatprep.subr.mxu0 0.0
    %168 = vmatpush1.msra.mxu0 0.0
    %169 = vmatprep.subr.mxu0 0.0
    %170 = vmatpush1.msra.mxu0 0.0
    %171 = vmatprep.subr.mxu0 0.0
    %172 = vmatpush1.msra.mxu0 0.0
    %173 = vmatprep.subr.mxu0 0.0
    %174 = vmatpush1.msra.mxu0 0.0
    %175 = vmatprep.subr.mxu0 0.0
    %176 = vmatpush1.msra.mxu0 0.0
    %177 = vmatprep.subr.mxu0 0.0
    %178 = vmatpush1.msra.mxu0 0.0
    %179 = vmatprep.subr.mxu0 0.0
    %180 = vmatpush1.msra.mxu0 0.0
    %181 = vmatprep.subr.mxu0 0.0
    %182 = vmatpush1.msra.mxu0 0.0
    %183 = vmatprep.subr.mxu0 0.0
    %184 = vmatpush1.msra.mxu0 0.0
    %185 = vmatprep.subr.mxu0 0.0
    %186 = vmatpush1.msra.mxu0 0.0
    %187 = vmatprep.subr.mxu0 0.0
    %188 = vmatpush1.msra.mxu0 0.0
    %189 = vmatprep.subr.mxu0 0.0
    %190 = vmatpush1.msra.mxu0 0.0
    %191 = vmatprep.subr.mxu0 0.0
    %192 = vmatpush1.msra.mxu0 0.0
    %193 = vmatprep.subr.mxu0 0.0
    %194 = vmatpush1.msra.mxu0 0.0
    %195 = vmatprep.subr.mxu0 0.0
    %196 = vmatpush1.msra.mxu0 0.0
    %197 = vmatprep.subr.mxu0 0.0
    %198 = vmatpush1.msra.mxu0 0.0
    %199 = vmatprep.subr.mxu0 0.0
    %200 = vmatpush1.msra.mxu0 0.0
    %201 = vmatprep.subr.mxu0 0.0
    %202 = vmatpush1.msra.mxu0 0.0
    %203 = vmatprep.subr.mxu0 0.0
    %204 = vmatpush1.msra.mxu0 0.0
    %205 = vmatprep.subr.mxu0 0.0
    %206 = vmatpush1.msra.mxu0 0.0
    %207 = vmatprep.subr.mxu0 0.0
    %208 = vmatpush1.msra.mxu0 0.0
    %209 = vmatprep.subr.mxu0 0.0
    %210 = vmatpush1.msra.mxu0 0.0
    %211 = vmatprep.subr.mxu0 0.0
    %212 = vmatpush1.msra.mxu0 0.0
    %213 = vmatprep.subr.mxu0 0.0
    %214 = vmatpush1.msra.mxu0 0.0
    %215 = vmatprep.subr.mxu0 0.0
    %216 = vmatpush1.msra.mxu0 0.0
    %217 = vmatprep.subr.mxu0 0.0
    %218 = vmatpush1.msra.mxu0 0.0
    %219 = vmatprep.subr.mxu0 0.0
    %220 = vmatpush1.msra.mxu0 0.0
    %221 = vmatprep.mubr.f32.mxu0 0.0
    %222 = vmatmul.mubr.f32.gmra.mrb[0].mxu0 %v155
    %v223 = vpop.f32.mrb[0].mxu0
    %v224 = vadd.f32 %v151, %v223
    %v225 = vpop.f32.mrb[0].mxu0
    %226 = vdwg.mxu0
    %v227 = vxor.u32 %v224, 2147483648
    %v228 = vmul.f32 %v227, 1.442695
    %v229 = vpow.pop %v228
    %v230 = vadd.f32 %v229, 1.0
    %v231 = vrcp.pop %v230
    %v232 = vmul.f32 1.0, %v231
    %v233 = vmul.f32 %v232, 2.0
    %v234 = vsub.f32 %v233, 1.0
    %v235 = vmul.f32 %v232, %v144
    %237 = vrot.lane.b32.xlu0 %v234, 32
    %v238 = vpop.permute.xlu0 %237
    %v240 = vmul.f32 %v232, %v238
    %242 = vrot.lane.b32.xlu0 %v240, 32
    %v243 = vpop.permute.xlu0 %242
    %v245 = vadd.f32 %v235, %v243
    %v246 = vtanh.pop %v245
    %248 = vrot.lane.b32.xlu0 %v246, 32
    %v249 = vpop.permute.xlu0 %248
    %v251 = vmul.f32 %v232, %v249
    %v252 = vld [vmem:[#allocation2 + $0x2] sm:$0x1]
    %254 = vrot.lane.b32.xlu0 %v251, 64
    %v255 = vpop.permute.xlu0 %254
    %v256 = vsel %vm52, %v255, 0
    %258 = vmatprep.subr.mxu0 0.0
    %259 = vmatpush1.msra.mxu0 %v26
    %260 = vmatprep.subr.mxu0 0.0
    %261 = vmatpush1.msra.mxu0 %v27
    %262 = vmatprep.subr.mxu0 0.0
    %263 = vmatpush1.msra.mxu0 %v28
    %264 = vmatprep.subr.mxu0 0.0
    %265 = vmatpush1.msra.mxu0 %v29
    %266 = vmatprep.subr.mxu0 0.0
    %267 = vmatpush1.msra.mxu0 0.0
    %268 = vmatprep.subr.mxu0 0.0
    %269 = vmatpush1.msra.mxu0 0.0
    %270 = vmatprep.subr.mxu0 0.0
    %271 = vmatpush1.msra.mxu0 0.0
    %272 = vmatprep.subr.mxu0 0.0
    %273 = vmatpush1.msra.mxu0 0.0
    %274 = vmatprep.subr.mxu0 0.0
    %275 = vmatpush1.msra.mxu0 0.0
    %276 = vmatprep.subr.mxu0 0.0
    %277 = vmatpush1.msra.mxu0 0.0
    %278 = vmatprep.subr.mxu0 0.0
    %279 = vmatpush1.msra.mxu0 0.0
    %280 = vmatprep.subr.mxu0 0.0
    %281 = vmatpush1.msra.mxu0 0.0
    %282 = vmatprep.subr.mxu0 0.0
    %283 = vmatpush1.msra.mxu0 0.0
    %284 = vmatprep.subr.mxu0 0.0
    %285 = vmatpush1.msra.mxu0 0.0
    %286 = vmatprep.subr.mxu0 0.0
    %287 = vmatpush1.msra.mxu0 0.0
    %288 = vmatprep.subr.mxu0 0.0
    %289 = vmatpush1.msra.mxu0 0.0
    %290 = vmatprep.subr.mxu0 0.0
    %291 = vmatpush1.msra.mxu0 0.0
    %292 = vmatprep.subr.mxu0 0.0
    %293 = vmatpush1.msra.mxu0 0.0
    %294 = vmatprep.subr.mxu0 0.0
    %295 = vmatpush1.msra.mxu0 0.0
    %296 = vmatprep.subr.mxu0 0.0
    %297 = vmatpush1.msra.mxu0 0.0
    %298 = vmatprep.subr.mxu0 0.0
    %299 = vmatpush1.msra.mxu0 0.0
    %300 = vmatprep.subr.mxu0 0.0
    %301 = vmatpush1.msra.mxu0 0.0
    %302 = vmatprep.subr.mxu0 0.0
    %303 = vmatpush1.msra.mxu0 0.0
    %304 = vmatprep.subr.mxu0 0.0
    %305 = vmatpush1.msra.mxu0 0.0
    %306 = vmatprep.subr.mxu0 0.0
    %307 = vmatpush1.msra.mxu0 0.0
    %308 = vmatprep.subr.mxu0 0.0
    %309 = vmatpush1.msra.mxu0 0.0
    %310 = vmatprep.subr.mxu0 0.0
    %311 = vmatpush1.msra.mxu0 0.0
    %312 = vmatprep.subr.mxu0 0.0
    %313 = vmatpush1.msra.mxu0 0.0
    %314 = vmatprep.subr.mxu0 0.0
    %315 = vmatpush1.msra.mxu0 0.0
    %316 = vmatprep.subr.mxu0 0.0
    %317 = vmatpush1.msra.mxu0 0.0
    %318 = vmatprep.subr.mxu0 0.0
    %319 = vmatpush1.msra.mxu0 0.0
    %320 = vmatprep.subr.mxu0 0.0
    %321 = vmatpush1.msra.mxu0 0.0
    %322 = vmatprep.mubr.f32.mxu0 0.0
    %323 = vmatmul.mubr.f32.gmra.mrb[0].mxu0 %v256
    %v324 = vpop.f32.mrb[0].mxu0
    %v325 = vadd.f32 %v252, %v324
    %v326 = vpop.f32.mrb[0].mxu0
    %327 = vdwg.mxu0
    %v328 = vxor.u32 %v325, 2147483648
    %v329 = vmul.f32 %v328, 1.442695
    %v330 = vpow.pop %v329
    %v331 = vadd.f32 %v330, 1.0
    %v332 = vrcp.pop %v331
    %v333 = vmul.f32 1.0, %v332
    %v334 = vmul.f32 %v333, 2.0
    %v335 = vsub.f32 %v334, 1.0
    %v336 = vmul.f32 %v333, %v245
    %338 = vrot.lane.b32.xlu0 %v335, 32
    %v339 = vpop.permute.xlu0 %338
    %v341 = vmul.f32 %v333, %v339
    %343 = vrot.lane.b32.xlu0 %v341, 32
    %v344 = vpop.permute.xlu0 %343
    %v346 = vadd.f32 %v336, %v344
    %v347 = vtanh.pop %v346
    %349 = vrot.lane.b32.xlu0 %v347, 32
    %v350 = vpop.permute.xlu0 %349
    %v352 = vmul.f32 %v333, %v350
    %v353 = vld [vmem:[#allocation2 + $0x3] sm:$0x1]
    %355 = vrot.lane.b32.xlu0 %v352, 64
    %v356 = vpop.permute.xlu0 %355
    %v357 = vsel %vm52, %v356, 0
    %359 = vmatprep.subr.mxu0 0.0
    %360 = vmatpush1.msra.mxu0 %v26
    %361 = vmatprep.subr.mxu0 0.0
    %362 = vmatpush1.msra.mxu0 %v27
    %363 = vmatprep.subr.mxu0 0.0
    %364 = vmatpush1.msra.mxu0 %v28
    %365 = vmatprep.subr.mxu0 0.0
    %366 = vmatpush1.msra.mxu0 %v29
    %367 = vmatprep.subr.mxu0 0.0
    %368 = vmatpush1.msra.mxu0 0.0
    %369 = vmatprep.subr.mxu0 0.0
    %370 = vmatpush1.msra.mxu0 0.0
    %371 = vmatprep.subr.mxu0 0.0
    %372 = vmatpush1.msra.mxu0 0.0
    %373 = vmatprep.subr.mxu0 0.0
    %374 = vmatpush1.msra.mxu0 0.0
    %375 = vmatprep.subr.mxu0 0.0
    %376 = vmatpush1.msra.mxu0 0.0
    %377 = vmatprep.subr.mxu0 0.0
    %378 = vmatpush1.msra.mxu0 0.0
    %379 = vmatprep.subr.mxu0 0.0
    %380 = vmatpush1.msra.mxu0 0.0
    %381 = vmatprep.subr.mxu0 0.0
    %382 = vmatpush1.msra.mxu0 0.0
    %383 = vmatprep.subr.mxu0 0.0
    %384 = vmatpush1.msra.mxu0 0.0
    %385 = vmatprep.subr.mxu0 0.0
    %386 = vmatpush1.msra.mxu0 0.0
    %387 = vmatprep.subr.mxu0 0.0
    %388 = vmatpush1.msra.mxu0 0.0
    %389 = vmatprep.subr.mxu0 0.0
    %390 = vmatpush1.msra.mxu0 0.0
    %391 = vmatprep.subr.mxu0 0.0
    %392 = vmatpush1.msra.mxu0 0.0
    %393 = vmatprep.subr.mxu0 0.0
    %394 = vmatpush1.msra.mxu0 0.0
    %395 = vmatprep.subr.mxu0 0.0
    %396 = vmatpush1.msra.mxu0 0.0
    %397 = vmatprep.subr.mxu0 0.0
    %398 = vmatpush1.msra.mxu0 0.0
    %399 = vmatprep.subr.mxu0 0.0
    %400 = vmatpush1.msra.mxu0 0.0
    %401 = vmatprep.subr.mxu0 0.0
    %402 = vmatpush1.msra.mxu0 0.0
    %403 = vmatprep.subr.mxu0 0.0
    %404 = vmatpush1.msra.mxu0 0.0
    %405 = vmatprep.subr.mxu0 0.0
    %406 = vmatpush1.msra.mxu0 0.0
    %407 = vmatprep.subr.mxu0 0.0
    %408 = vmatpush1.msra.mxu0 0.0
    %409 = vmatprep.subr.mxu0 0.0
    %410 = vmatpush1.msra.mxu0 0.0
    %411 = vmatprep.subr.mxu0 0.0
    %412 = vmatpush1.msra.mxu0 0.0
    %413 = vmatprep.subr.mxu0 0.0
    %414 = vmatpush1.msra.mxu0 0.0
    %415 = vmatprep.subr.mxu0 0.0
    %416 = vmatpush1.msra.mxu0 0.0
    %417 = vmatprep.subr.mxu0 0.0
    %418 = vmatpush1.msra.mxu0 0.0
    %419 = vmatprep.subr.mxu0 0.0
    %420 = vmatpush1.msra.mxu0 0.0
    %421 = vmatprep.subr.mxu0 0.0
    %422 = vmatpush1.msra.mxu0 0.0
    %423 = vmatprep.mubr.f32.mxu0 0.0
    %424 = vmatmul.mubr.f32.gmra.mrb[0].mxu0 %v357
    %v425 = vpop.f32.mrb[0].mxu0
    %v426 = vadd.f32 %v353, %v425
    %v427 = vpop.f32.mrb[0].mxu0
    %428 = vdwg.mxu0
    %v429 = vxor.u32 %v426, 2147483648
    %v430 = vmul.f32 %v429, 1.442695
    %v431 = vpow.pop %v430
    %v432 = vadd.f32 %v431, 1.0
    %v433 = vrcp.pop %v432
    %v434 = vmul.f32 1.0, %v433
    %v435 = vmul.f32 %v434, 2.0
    %v436 = vsub.f32 %v435, 1.0
    %v437 = vmul.f32 %v434, %v346
    %439 = vrot.lane.b32.xlu0 %v436, 32
    %v440 = vpop.permute.xlu0 %439
    %v442 = vmul.f32 %v434, %v440
    %444 = vrot.lane.b32.xlu0 %v442, 32
    %v445 = vpop.permute.xlu0 %444
    %v447 = vadd.f32 %v437, %v445
    %v448 = vtanh.pop %v447
    %450 = vrot.lane.b32.xlu0 %v448, 32
    %v451 = vpop.permute.xlu0 %450
    %v453 = vmul.f32 %v434, %v451
    %v454 = vld [vmem:[#allocation2 + $0x4] sm:$0x1]
    %456 = vrot.lane.b32.xlu0 %v453, 64
    %v457 = vpop.permute.xlu0 %456
    %v458 = vsel %vm52, %v457, 0
    %460 = vmatprep.subr.mxu0 0.0
    %461 = vmatpush1.msra.mxu0 %v26
    %462 = vmatprep.subr.mxu0 0.0
    %463 = vmatpush1.msra.mxu0 %v27
    %464 = vmatprep.subr.mxu0 0.0
    %465 = vmatpush1.msra.mxu0 %v28
    %466 = vmatprep.subr.mxu0 0.0
    %467 = vmatpush1.msra.mxu0 %v29
    %468 = vmatprep.subr.mxu0 0.0
    %469 = vmatpush1.msra.mxu0 0.0
    %470 = vmatprep.subr.mxu0 0.0
    %471 = vmatpush1.msra.mxu0 0.0
    %472 = vmatprep.subr.mxu0 0.0
    %473 = vmatpush1.msra.mxu0 0.0
    %474 = vmatprep.subr.mxu0 0.0
    %475 = vmatpush1.msra.mxu0 0.0
    %476 = vmatprep.subr.mxu0 0.0
    %477 = vmatpush1.msra.mxu0 0.0
    %478 = vmatprep.subr.mxu0 0.0
    %479 = vmatpush1.msra.mxu0 0.0
    %480 = vmatprep.subr.mxu0 0.0
    %481 = vmatpush1.msra.mxu0 0.0
    %482 = vmatprep.subr.mxu0 0.0
    %483 = vmatpush1.msra.mxu0 0.0
    %484 = vmatprep.subr.mxu0 0.0
    %485 = vmatpush1.msra.mxu0 0.0
    %486 = vmatprep.subr.mxu0 0.0
    %487 = vmatpush1.msra.mxu0 0.0
    %488 = vmatprep.subr.mxu0 0.0
    %489 = vmatpush1.msra.mxu0 0.0
    %490 = vmatprep.subr.mxu0 0.0
    %491 = vmatpush1.msra.mxu0 0.0
    %492 = vmatprep.subr.mxu0 0.0
    %493 = vmatpush1.msra.mxu0 0.0
    %494 = vmatprep.subr.mxu0 0.0
    %495 = vmatpush1.msra.mxu0 0.0
    %496 = vmatprep.subr.mxu0 0.0
    %497 = vmatpush1.msra.mxu0 0.0
    %498 = vmatprep.subr.mxu0 0.0
    %499 = vmatpush1.msra.mxu0 0.0
    %500 = vmatprep.subr.mxu0 0.0
    %501 = vmatpush1.msra.mxu0 0.0
    %502 = vmatprep.subr.mxu0 0.0
    %503 = vmatpush1.msra.mxu0 0.0
    %504 = vmatprep.subr.mxu0 0.0
    %505 = vmatpush1.msra.mxu0 0.0
    %506 = vmatprep.subr.mxu0 0.0
    %507 = vmatpush1.msra.mxu0 0.0
    %508 = vmatprep.subr.mxu0 0.0
    %509 = vmatpush1.msra.mxu0 0.0
    %510 = vmatprep.subr.mxu0 0.0
    %511 = vmatpush1.msra.mxu0 0.0
    %512 = vmatprep.subr.mxu0 0.0
    %513 = vmatpush1.msra.mxu0 0.0
    %514 = vmatprep.subr.mxu0 0.0
    %515 = vmatpush1.msra.mxu0 0.0
    %516 = vmatprep.subr.mxu0 0.0
    %517 = vmatpush1.msra.mxu0 0.0
    %518 = vmatprep.subr.mxu0 0.0
    %519 = vmatpush1.msra.mxu0 0.0
    %520 = vmatprep.subr.mxu0 0.0
    %521 = vmatpush1.msra.mxu0 0.0
    %522 = vmatprep.subr.mxu0 0.0
    %523 = vmatpush1.msra.mxu0 0.0
    %524 = vmatprep.mubr.f32.mxu0 0.0
    %525 = vmatmul.mubr.f32.gmra.mrb[0].mxu0 %v458
    %v526 = vpop.f32.mrb[0].mxu0
    %v527 = vadd.f32 %v454, %v526
    %v528 = vpop.f32.mrb[0].mxu0
    %529 = vdwg.mxu0
    %v530 = vxor.u32 %v527, 2147483648
    %v531 = vmul.f32 %v530, 1.442695
    %v532 = vpow.pop %v531
    %v533 = vadd.f32 %v532, 1.0
    %v534 = vrcp.pop %v533
    %v535 = vmul.f32 1.0, %v534
    %v536 = vmul.f32 %v535, 2.0
    %v537 = vsub.f32 %v536, 1.0
    %v538 = vmul.f32 %v535, %v447
    %540 = vrot.lane.b32.xlu0 %v537, 32
    %v541 = vpop.permute.xlu0 %540
    %v543 = vmul.f32 %v535, %v541
    %545 = vrot.lane.b32.xlu0 %v543, 32
    %v546 = vpop.permute.xlu0 %545
    %v548 = vadd.f32 %v538, %v546
    %v549 = vtanh.pop %v548
    %551 = vrot.lane.b32.xlu0 %v549, 32
    %v552 = vpop.permute.xlu0 %551
    %v554 = vmul.f32 %v535, %v552
    %v555 = vld [vmem:[#allocation2 + $0x5] sm:$0x1]
    %557 = vrot.lane.b32.xlu0 %v554, 64
    %v558 = vpop.permute.xlu0 %557
    %v559 = vsel %vm52, %v558, 0
    %561 = vmatprep.subr.mxu0 0.0
    %562 = vmatpush1.msra.mxu0 %v26
    %563 = vmatprep.subr.mxu0 0.0
    %564 = vmatpush1.msra.mxu0 %v27
    %565 = vmatprep.subr.mxu0 0.0
    %566 = vmatpush1.msra.mxu0 %v28
    %567 = vmatprep.subr.mxu0 0.0
    %568 = vmatpush1.msra.mxu0 %v29
    %569 = vmatprep.subr.mxu0 0.0
    %570 = vmatpush1.msra.mxu0 0.0
    %571 = vmatprep.subr.mxu0 0.0
    %572 = vmatpush1.msra.mxu0 0.0
    %573 = vmatprep.subr.mxu0 0.0
    %574 = vmatpush1.msra.mxu0 0.0
    %575 = vmatprep.subr.mxu0 0.0
    %576 = vmatpush1.msra.mxu0 0.0
    %577 = vmatprep.subr.mxu0 0.0
    %578 = vmatpush1.msra.mxu0 0.0
    %579 = vmatprep.subr.mxu0 0.0
    %580 = vmatpush1.msra.mxu0 0.0
    %581 = vmatprep.subr.mxu0 0.0
    %582 = vmatpush1.msra.mxu0 0.0
    %583 = vmatprep.subr.mxu0 0.0
    %584 = vmatpush1.msra.mxu0 0.0
    %585 = vmatprep.subr.mxu0 0.0
    %586 = vmatpush1.msra.mxu0 0.0
    %587 = vmatprep.subr.mxu0 0.0
    %588 = vmatpush1.msra.mxu0 0.0
    %589 = vmatprep.subr.mxu0 0.0
    %590 = vmatpush1.msra.mxu0 0.0
    %591 = vmatprep.subr.mxu0 0.0
    %592 = vmatpush1.msra.mxu0 0.0
    %593 = vmatprep.subr.mxu0 0.0
    %594 = vmatpush1.msra.mxu0 0.0
    %595 = vmatprep.subr.mxu0 0.0
    %596 = vmatpush1.msra.mxu0 0.0
    %597 = vmatprep.subr.mxu0 0.0
    %598 = vmatpush1.msra.mxu0 0.0
    %599 = vmatprep.subr.mxu0 0.0
    %600 = vmatpush1.msra.mxu0 0.0
    %601 = vmatprep.subr.mxu0 0.0
    %602 = vmatpush1.msra.mxu0 0.0
    %603 = vmatprep.subr.mxu0 0.0
    %604 = vmatpush1.msra.mxu0 0.0
    %605 = vmatprep.subr.mxu0 0.0
    %606 = vmatpush1.msra.mxu0 0.0
    %607 = vmatprep.subr.mxu0 0.0
    %608 = vmatpush1.msra.mxu0 0.0
    %609 = vmatprep.subr.mxu0 0.0
    %610 = vmatpush1.msra.mxu0 0.0
    %611 = vmatprep.subr.mxu0 0.0
    %612 = vmatpush1.msra.mxu0 0.0
    %613 = vmatprep.subr.mxu0 0.0
    %614 = vmatpush1.msra.mxu0 0.0
    %615 = vmatprep.subr.mxu0 0.0
    %616 = vmatpush1.msra.mxu0 0.0
    %617 = vmatprep.subr.mxu0 0.0
    %618 = vmatpush1.msra.mxu0 0.0
    %619 = vmatprep.subr.mxu0 0.0
    %620 = vmatpush1.msra.mxu0 0.0
    %621 = vmatprep.subr.mxu0 0.0
    %622 = vmatpush1.msra.mxu0 0.0
    %623 = vmatprep.subr.mxu0 0.0
    %624 = vmatpush1.msra.mxu0 0.0
    %625 = vmatprep.mubr.f32.mxu0 0.0
    %626 = vmatmul.mubr.f32.gmra.mrb[0].mxu0 %v559
    %v627 = vpop.f32.mrb[0].mxu0
    %v628 = vadd.f32 %v555, %v627
    %v629 = vpop.f32.mrb[0].mxu0
    %630 = vdwg.mxu0
    %v631 = vxor.u32 %v628, 2147483648
    %v632 = vmul.f32 %v631, 1.442695
    %v633 = vpow.pop %v632
    %v634 = vadd.f32 %v633, 1.0
    %v635 = vrcp.pop %v634
    %v636 = vmul.f32 1.0, %v635
    %v637 = vmul.f32 %v636, 2.0
    %v638 = vsub.f32 %v637, 1.0
    %v639 = vmul.f32 %v636, %v548
    %641 = vrot.lane.b32.xlu0 %v638, 32
    %v642 = vpop.permute.xlu0 %641
    %v644 = vmul.f32 %v636, %v642
    %646 = vrot.lane.b32.xlu0 %v644, 32
    %v647 = vpop.permute.xlu0 %646
    %v649 = vadd.f32 %v639, %v647
    %v650 = vtanh.pop %v649
    %652 = vrot.lane.b32.xlu0 %v650, 32
    %v653 = vpop.permute.xlu0 %652
    %v655 = vmul.f32 %v636, %v653
    %v656 = vld [vmem:[#allocation2 + $0x6] sm:$0x1]
    %658 = vrot.lane.b32.xlu0 %v655, 64
    %v659 = vpop.permute.xlu0 %658
    %v660 = vsel %vm52, %v659, 0
    %662 = vmatprep.subr.mxu0 0.0
    %663 = vmatpush1.msra.mxu0 %v26
    %664 = vmatprep.subr.mxu0 0.0
    %665 = vmatpush1.msra.mxu0 %v27
    %666 = vmatprep.subr.mxu0 0.0
    %667 = vmatpush1.msra.mxu0 %v28
    %668 = vmatprep.subr.mxu0 0.0
    %669 = vmatpush1.msra.mxu0 %v29
    %670 = vmatprep.subr.mxu0 0.0
    %671 = vmatpush1.msra.mxu0 0.0
    %672 = vmatprep.subr.mxu0 0.0
    %673 = vmatpush1.msra.mxu0 0.0
    %674 = vmatprep.subr.mxu0 0.0
    %675 = vmatpush1.msra.mxu0 0.0
    %676 = vmatprep.subr.mxu0 0.0
    %677 = vmatpush1.msra.mxu0 0.0
    %678 = vmatprep.subr.mxu0 0.0
    %679 = vmatpush1.msra.mxu0 0.0
    %680 = vmatprep.subr.mxu0 0.0
    %681 = vmatpush1.msra.mxu0 0.0
    %682 = vmatprep.subr.mxu0 0.0
    %683 = vmatpush1.msra.mxu0 0.0
    %684 = vmatprep.subr.mxu0 0.0
    %685 = vmatpush1.msra.mxu0 0.0
    %686 = vmatprep.subr.mxu0 0.0
    %687 = vmatpush1.msra.mxu0 0.0
    %688 = vmatprep.subr.mxu0 0.0
    %689 = vmatpush1.msra.mxu0 0.0
    %690 = vmatprep.subr.mxu0 0.0
    %691 = vmatpush1.msra.mxu0 0.0
    %692 = vmatprep.subr.mxu0 0.0
    %693 = vmatpush1.msra.mxu0 0.0
    %694 = vmatprep.subr.mxu0 0.0
    %695 = vmatpush1.msra.mxu0 0.0
    %696 = vmatprep.subr.mxu0 0.0
    %697 = vmatpush1.msra.mxu0 0.0
    %698 = vmatprep.subr.mxu0 0.0
    %699 = vmatpush1.msra.mxu0 0.0
    %700 = vmatprep.subr.mxu0 0.0
    %701 = vmatpush1.msra.mxu0 0.0
    %702 = vmatprep.subr.mxu0 0.0
    %703 = vmatpush1.msra.mxu0 0.0
    %704 = vmatprep.subr.mxu0 0.0
    %705 = vmatpush1.msra.mxu0 0.0
    %706 = vmatprep.subr.mxu0 0.0
    %707 = vmatpush1.msra.mxu0 0.0
    %708 = vmatprep.subr.mxu0 0.0
    %709 = vmatpush1.msra.mxu0 0.0
    %710 = vmatprep.subr.mxu0 0.0
    %711 = vmatpush1.msra.mxu0 0.0
    %712 = vmatprep.subr.mxu0 0.0
    %713 = vmatpush1.msra.mxu0 0.0
    %714 = vmatprep.subr.mxu0 0.0
    %715 = vmatpush1.msra.mxu0 0.0
    %716 = vmatprep.subr.mxu0 0.0
    %717 = vmatpush1.msra.mxu0 0.0
    %718 = vmatprep.subr.mxu0 0.0
    %719 = vmatpush1.msra.mxu0 0.0
    %720 = vmatprep.subr.mxu0 0.0
    %721 = vmatpush1.msra.mxu0 0.0
    %722 = vmatprep.subr.mxu0 0.0
    %723 = vmatpush1.msra.mxu0 0.0
    %724 = vmatprep.subr.mxu0 0.0
    %725 = vmatpush1.msra.mxu0 0.0
    %726 = vmatprep.mubr.f32.mxu0 0.0
    %727 = vmatmul.mubr.f32.gmra.mrb[0].mxu0 %v660
    %v728 = vpop.f32.mrb[0].mxu0
    %v729 = vadd.f32 %v656, %v728
    %v730 = vpop.f32.mrb[0].mxu0
    %731 = vdwg.mxu0
    %v732 = vxor.u32 %v729, 2147483648
    %v733 = vmul.f32 %v732, 1.442695
    %v734 = vpow.pop %v733
    %v735 = vadd.f32 %v734, 1.0
    %v736 = vrcp.pop %v735
    %v737 = vmul.f32 1.0, %v736
    %v738 = vmul.f32 %v737, 2.0
    %v739 = vsub.f32 %v738, 1.0
    %v740 = vmul.f32 %v737, %v649
    %742 = vrot.lane.b32.xlu0 %v739, 32
    %v743 = vpop.permute.xlu0 %742
    %v745 = vmul.f32 %v737, %v743
    %747 = vrot.lane.b32.xlu0 %v745, 32
    %v748 = vpop.permute.xlu0 %747
    %v750 = vadd.f32 %v740, %v748
    %v751 = vtanh.pop %v750
    %753 = vrot.lane.b32.xlu0 %v751, 32
    %v754 = vpop.permute.xlu0 %753
    %v756 = vmul.f32 %v737, %v754
    %v757 = vld [vmem:[#allocation2 + $0x7] sm:$0x1]
    %759 = vrot.lane.b32.xlu0 %v756, 64
    %v760 = vpop.permute.xlu0 %759
    %v761 = vsel %vm52, %v760, 0
    %763 = vmatprep.subr.mxu0 0.0
    %764 = vmatpush1.msra.mxu0 %v26
    %765 = vmatprep.subr.mxu0 0.0
    %766 = vmatpush1.msra.mxu0 %v27
    %767 = vmatprep.subr.mxu0 0.0
    %768 = vmatpush1.msra.mxu0 %v28
    %769 = vmatprep.subr.mxu0 0.0
    %770 = vmatpush1.msra.mxu0 %v29
    %771 = vmatprep.subr.mxu0 0.0
    %772 = vmatpush1.msra.mxu0 0.0
    %773 = vmatprep.subr.mxu0 0.0
    %774 = vmatpush1.msra.mxu0 0.0
    %775 = vmatprep.subr.mxu0 0.0
    %776 = vmatpush1.msra.mxu0 0.0
    %777 = vmatprep.subr.mxu0 0.0
    %778 = vmatpush1.msra.mxu0 0.0
    %779 = vmatprep.subr.mxu0 0.0
    %780 = vmatpush1.msra.mxu0 0.0
    %781 = vmatprep.subr.mxu0 0.0
    %782 = vmatpush1.msra.mxu0 0.0
    %783 = vmatprep.subr.mxu0 0.0
    %784 = vmatpush1.msra.mxu0 0.0
    %785 = vmatprep.subr.mxu0 0.0
    %786 = vmatpush1.msra.mxu0 0.0
    %787 = vmatprep.subr.mxu0 0.0
    %788 = vmatpush1.msra.mxu0 0.0
    %789 = vmatprep.subr.mxu0 0.0
    %790 = vmatpush1.msra.mxu0 0.0
    %791 = vmatprep.subr.mxu0 0.0
    %792 = vmatpush1.msra.mxu0 0.0
    %793 = vmatprep.subr.mxu0 0.0
    %794 = vmatpush1.msra.mxu0 0.0
    %795 = vmatprep.subr.mxu0 0.0
    %796 = vmatpush1.msra.mxu0 0.0
    %797 = vmatprep.subr.mxu0 0.0
    %798 = vmatpush1.msra.mxu0 0.0
    %799 = vmatprep.subr.mxu0 0.0
    %800 = vmatpush1.msra.mxu0 0.0
    %801 = vmatprep.subr.mxu0 0.0
    %802 = vmatpush1.msra.mxu0 0.0
    %803 = vmatprep.subr.mxu0 0.0
    %804 = vmatpush1.msra.mxu0 0.0
    %805 = vmatprep.subr.mxu0 0.0
    %806 = vmatpush1.msra.mxu0 0.0
    %807 = vmatprep.subr.mxu0 0.0
    %808 = vmatpush1.msra.mxu0 0.0
    %809 = vmatprep.subr.mxu0 0.0
    %810 = vmatpush1.msra.mxu0 0.0
    %811 = vmatprep.subr.mxu0 0.0
    %812 = vmatpush1.msra.mxu0 0.0
    %813 = vmatprep.subr.mxu0 0.0
    %814 = vmatpush1.msra.mxu0 0.0
    %815 = vmatprep.subr.mxu0 0.0
    %816 = vmatpush1.msra.mxu0 0.0
    %817 = vmatprep.subr.mxu0 0.0
    %818 = vmatpush1.msra.mxu0 0.0
    %819 = vmatprep.subr.mxu0 0.0
    %820 = vmatpush1.msra.mxu0 0.0
    %821 = vmatprep.subr.mxu0 0.0
    %822 = vmatpush1.msra.mxu0 0.0
    %823 = vmatprep.subr.mxu0 0.0
    %824 = vmatpush1.msra.mxu0 0.0
    %825 = vmatprep.subr.mxu0 0.0
    %826 = vmatpush1.msra.mxu0 0.0
    %827 = vmatprep.mubr.f32.mxu0 0.0
    %828 = vmatmul.mubr.f32.gmra.mrb[0].mxu0 %v761
    %v829 = vpop.f32.mrb[0].mxu0
    %v830 = vadd.f32 %v757, %v829
    %v831 = vpop.f32.mrb[0].mxu0
    %832 = vdwg.mxu0
    %v833 = vxor.u32 %v830, 2147483648
    %v834 = vmul.f32 %v833, 1.442695
    %v835 = vpow.pop %v834
    %v836 = vadd.f32 %v835, 1.0
    %v837 = vrcp.pop %v836
    %v838 = vmul.f32 1.0, %v837
    %v839 = vmul.f32 %v838, 2.0
    %v840 = vsub.f32 %v839, 1.0
    %v841 = vmul.f32 %v838, %v750
    %843 = vrot.lane.b32.xlu0 %v840, 32
    %v844 = vpop.permute.xlu0 %843
    %v846 = vmul.f32 %v838, %v844
    %848 = vrot.lane.b32.xlu0 %v846, 32
    %v849 = vpop.permute.xlu0 %848
    %v851 = vadd.f32 %v841, %v849
    %v852 = vtanh.pop %v851
    %854 = vrot.lane.b32.xlu0 %v852, 32
    %v855 = vpop.permute.xlu0 %854
    %v857 = vmul.f32 %v838, %v855
    %859 = vrot.lane.b32.xlu0 %v32, 64
    %v860 = vpop.permute.xlu0 %859
    %v862 = vmul.f32 %v857, %v860
    %864 = vrot.lane.b32.xlu0 %v862, 64
    %v865 = vpop.permute.xlu0 %864
    %vm867 = vcmask 253952
    %v868 = vsel %vm867, %v865, 0.0
    %869 = vadd.xlane.f32.xlu0 %v868
    %v870 = vpop.xlane.xlu0 %869
    %v871 = vadd.f32 %v870, %v33
    %vm872 = vcmask 0
    %873 = vst.msk [vmem:[#allocation6] sm:$0x1] %vm872, %v871
    // Predicated region
    $region14: #{lstm_forward.1} parent=1 // pred_check
      _
    $region15: #{lstm_forward.1} parent=1 // pred_check_branch
      %875 = sbr.rel (0) target = $region17
    $region16: #{lstm_forward.1} parent=1 // pred_region
      %s877 = ssub.s32 16, 16
      %878 = vsyncadd [#allocation5], %s877
      %s880 = sshll.u32 [#allocation6], 4
      %s881 = int_to_ptr.vmem [resolvable:$true] %s880
      %883 = dma.vmem_to_hbm [thread:$0]  %s881, 16, %s2, [#allocation5]
    $region17: #{lstm_forward.1} parent=1 // pred_fallthru
      _
    // Predicated region
    $region18: #{lstm_forward.1} parent=1 // pred_check
      _
    $region19: #{lstm_forward.1} parent=1 // pred_check_branch
      %885 = sbr.rel (0) target = $region21
    $region20: #{lstm_forward.1} parent=1 // pred_region
      %886 = dma.done [#allocation5], 16
    $region21: #{lstm_forward.1} parent=1 // pred_fallthru
      _
    %887 = vsyncpa [#allocation4], 1
    %888 = vsyncpa [#allocation5], 1

</llo_original>
